<compile_context>
chip_gen: v5e
topology: v5e:2x2
jax: 0.10.0
libtpu: 0.0.40
codegen_flags: <defaults>
</compile_context>

<pallas_src>
import jax
import jax.numpy as jnp
from jax.experimental import pallas as pl
from jax.experimental.pallas import tpu as pltpu

H1 = 128      # fc1 width
H2 = 64       # fc2 width
LANE = 128    # TPU lane width


def _round_up(x, m):
    return (x + m - 1) // m * m


def portfolio_nn_kernel(x_ref, w1_ref, b1_ref, w2_ref, b2_ref,
                        w3_ref, b3_ref, o_ref):
    """Fused MLP for one batch tile: fc1/relu -> fc2/relu -> fc3 -> softmax."""
    x = x_ref[...]                                            # (TB, d_in) bf16

    # fc1 + ReLU (dropout1 is identity in eval). bf16 MXU, f32 accumulate.
    h1 = jnp.dot(x, w1_ref[...], preferred_element_type=jnp.float32)
    h1 = jnp.maximum(h1 + b1_ref[...], 0.0)                   # (TB, 128) f32

    # fc2 + ReLU (dropout2 is identity in eval).
    h2 = jnp.dot(h1.astype(w2_ref.dtype), w2_ref[...],
                 preferred_element_type=jnp.float32)
    h2 = jnp.maximum(h2 + b2_ref[...], 0.0)                   # (TB, 64) f32

    # fc3 (lane-padded to 128) + softmax over features (dim=1).
    # Padded lanes have bias -1e30 -> exp underflows to 0 -> no contribution.
    logits = jnp.dot(h2.astype(w3_ref.dtype), w3_ref[...],
                     preferred_element_type=jnp.float32)
    logits = logits + b3_ref[...]                             # (TB, 128) f32
    m = jnp.max(logits, axis=1, keepdims=True)
    e = jnp.exp(logits - m)
    denom = jnp.sum(e, axis=1, keepdims=True)
    o_ref[...] = (e * pl.reciprocal(denom, approx=True)).astype(o_ref.dtype)


def portfolio_nn_forward(x, params, *, block_b=256, mxu_dtype=jnp.bfloat16):
    """x: (B, ...) flattened to (B, D_in). Returns (B, D_out) softmax probs."""
    w1, b1, w2, b2, w3, b3 = params
    B = x.shape[0]
    x2d = x.reshape(B, -1).astype(jnp.float32)                # mirrors x.view(B, -1)
    d_in = x2d.shape[1]
    d_out = w3.shape[1]

    # --- padding: batch to a TB multiple, output features to a full lane ---
    TB = block_b
    B_pad = _round_up(max(B, 1), TB)
    d_out_pad = _round_up(d_out, LANE)

    x_c = jnp.zeros((B_pad, d_in), jnp.float32).at[:B].set(x2d).astype(mxu_dtype)
    w1_c = w1.astype(mxu_dtype)                               # (d_in, 128)
    w2_c = w2.astype(mxu_dtype)                               # (128, 64)
    w3_c = (jnp.zeros((H2, d_out_pad), jnp.float32)
            .at[:, :d_out].set(w3.astype(jnp.float32)).astype(mxu_dtype))
    b1r = b1.reshape(1, H1).astype(jnp.float32)
    b2r = b2.reshape(1, H2).astype(jnp.float32)
    b3r = (jnp.full((1, d_out_pad), -1e30, jnp.float32)
           .at[0, :d_out].set(b3.astype(jnp.float32)))

    grid = (B_pad // TB,)
    # Weights/biases: full-array blocks with constant index maps -> stay
    # resident in VMEM; no per-tile re-DMA.
    resident = lambda shape: pl.BlockSpec(shape, lambda i: (0,) * len(shape))

    flops = 2 * B_pad * (d_in * H1 + H1 * H2 + H2 * d_out_pad)
    transcendentals = B_pad * (d_out_pad + 1)                 # exp + reciprocal
    bytes_accessed = (x_c.size * x_c.dtype.itemsize
                      + sum(a.size * a.dtype.itemsize
                            for a in (w1_c, b1r, w2_c, b2r, w3_c, b3r))
                      + B_pad * d_out_pad * 4)

    out = pl.pallas_call(
        portfolio_nn_kernel,
        out_shape=jax.ShapeDtypeStruct((B_pad, d_out_pad), jnp.float32),
        grid=grid,
        in_specs=[
            pl.BlockSpec((TB, d_in), lambda i: (i, 0)),       # streamed x tile
            resident(w1_c.shape), resident(b1r.shape),
            resident(w2_c.shape), resident(b2r.shape),
            resident(w3_c.shape), resident(b3r.shape),
        ],
        out_specs=pl.BlockSpec((TB, d_out_pad), lambda i: (i, 0)),
        compiler_params=pltpu.CompilerParams(
            dimension_semantics=("parallel",),                # megacore on v7x
            vmem_limit_bytes=32 * 1024 * 1024,                # safe on 64 MiB v7x
        ),
        cost_estimate=pl.CostEstimate(
            flops=flops,
            transcendentals=transcendentals,
            bytes_accessed=bytes_accessed),
    )(x_c, w1_c, b1r, w2_c, b2r, w3_c, b3r)

    return out[:B, :d_out]


def init_params(key, input_size, output_size):
    """Deterministic init; weights stored as (in, out) (transpose of nn.Linear)."""
    k1, k2, k3, k4, k5, k6 = jax.random.split(key, 6)

    def lin(kw, kb, fan_in, fan_out):
        bound = 1.0 / jnp.sqrt(jnp.float32(fan_in))
        w = jax.random.uniform(kw, (fan_in, fan_out), jnp.float32, -bound, bound)
        b = jax.random.uniform(kb, (fan_out,), jnp.float32, -bound, bound)
        return w, b

    w1, b1 = lin(k1, k2, input_size, H1)
    w2, b2 = lin(k3, k4, H1, H2)
    w3, b3 = lin(k5, k6, H2, output_size)
    return (w1, b1, w2, b2, w3, b3)


if __name__ == "__main__":
    key = jax.random.PRNGKey(0)
    kx, kp = jax.random.split(key)

    batch, feat_a, feat_b, output_size = 8, 4, 8, 8
    input_size = feat_a * feat_b  # 32, flattened by x.view(B, -1)

    x = jax.random.normal(kx, (batch, feat_a, feat_b), jnp.float32)
    params = init_params(kp, input_size, output_size)

    out = portfolio_nn_forward(x, params)
    out = jax.block_until_ready(out)

    # Pure-JAX reference mirroring the kernel's bf16-operand / f32-accumulate
    # precision so tolerances stay tight (approx reciprocal adds ~1e-4 rel).
    w1, b1, w2, b2, w3, b3 = params
    bf = jnp.bfloat16
    xf = x.reshape(batch, -1).astype(bf)
    h1 = jnp.maximum(
        jnp.dot(xf, w1.astype(bf), preferred_element_type=jnp.float32) + b1, 0.0)
    h2 = jnp.maximum(
        jnp.dot(h1.astype(bf), w2.astype(bf),
                preferred_element_type=jnp.float32) + b2, 0.0)
    logits = jnp.dot(h2.astype(bf), w3.astype(bf),
                     preferred_element_type=jnp.float32) + b3
    ref = jax.nn.softmax(logits, axis=1)

    assert out.shape == (batch, output_size)
    assert jnp.allclose(out, ref, atol=2e-3, rtol=2e-3)
    assert jnp.allclose(jnp.sum(out, axis=1), 1.0, atol=2e-3)

    print("KERNEL_OK")
</pallas_src>

<mosaic_0001>
module attributes {stable_mosaic.version = 11 : i64} {
  func.func @portfolio_nn_kernel(%arg0: i32, %arg1: memref<256x32xbf16, #tpu.memory_space<vmem>>, %arg2: memref<32x128xbf16, #tpu.memory_space<vmem>>, %arg3: memref<1x128xf32, #tpu.memory_space<vmem>>, %arg4: memref<128x64xbf16, #tpu.memory_space<vmem>>, %arg5: memref<1x64xf32, #tpu.memory_space<vmem>>, %arg6: memref<64x128xbf16, #tpu.memory_space<vmem>>, %arg7: memref<1x128xf32, #tpu.memory_space<vmem>>, %arg8: memref<256x128xf32, #tpu.memory_space<vmem>>) attributes {dimension_semantics = [#tpu.dimension_semantics<parallel>], iteration_bounds = array<i64: 1>, scalar_prefetch = 0 : i64, scratch_operands = 0 : i64, tpu.core_type = #tpu.core_type<tc>, window_params = [{transform_indices = @transform_0, window_bounds = array<i64: 256, 32>}, {pipeline_mode = #tpu.pipeline_mode<synchronous>, transform_indices = @transform_1, window_bounds = array<i64: 32, 128>}, {pipeline_mode = #tpu.pipeline_mode<synchronous>, transform_indices = @transform_2, window_bounds = array<i64: 1, 128>}, {pipeline_mode = #tpu.pipeline_mode<synchronous>, transform_indices = @transform_3, window_bounds = array<i64: 128, 64>}, {pipeline_mode = #tpu.pipeline_mode<synchronous>, transform_indices = @transform_4, window_bounds = array<i64: 1, 64>}, {pipeline_mode = #tpu.pipeline_mode<synchronous>, transform_indices = @transform_5, window_bounds = array<i64: 64, 128>}, {pipeline_mode = #tpu.pipeline_mode<synchronous>, transform_indices = @transform_6, window_bounds = array<i64: 1, 128>}, {transform_indices = @transform_7, window_bounds = array<i64: 256, 128>}]} {
    %c0 = arith.constant 0 : index
    %c0_0 = arith.constant 0 : index
    %0 = vector.load %arg1[%c0, %c0_0] : memref<256x32xbf16, #tpu.memory_space<vmem>>, vector<256x32xbf16>
    %c0_1 = arith.constant 0 : index
    %c0_2 = arith.constant 0 : index
    %1 = vector.load %arg2[%c0_1, %c0_2] : memref<32x128xbf16, #tpu.memory_space<vmem>>, vector<32x128xbf16>
    %cst = arith.constant dense<0.000000e+00> : vector<256x128xf32>
    %2 = tpu.matmul %0, %1, %cst {dimension_numbers = #tpu.dot_dimension_numbers<[1], [0], [0], [1], [0, 0, 1, 1], [], []>} : vector<256x32xbf16>, vector<32x128xbf16>, vector<256x128xf32> -> vector<256x128xf32>
    %c0_3 = arith.constant 0 : index
    %c0_4 = arith.constant 0 : index
    %3 = vector.load %arg3[%c0_3, %c0_4] : memref<1x128xf32, #tpu.memory_space<vmem>>, vector<1x128xf32>
    %4 = vector.broadcast %3 : vector<1x128xf32> to vector<256x128xf32>
    %5 = arith.addf %2, %4 : vector<256x128xf32>
    %cst_5 = arith.constant 0.000000e+00 : f32
    %6 = vector.broadcast %cst_5 : f32 to vector<256x128xf32>
    %7 = arith.maximumf %5, %6 : vector<256x128xf32>
    %8 = arith.truncf %7 : vector<256x128xf32> to vector<256x128xbf16>
    %c0_6 = arith.constant 0 : index
    %c0_7 = arith.constant 0 : index
    %9 = vector.load %arg4[%c0_6, %c0_7] : memref<128x64xbf16, #tpu.memory_space<vmem>>, vector<128x64xbf16>
    %cst_8 = arith.constant dense<0.000000e+00> : vector<256x64xf32>
    %10 = tpu.matmul %8, %9, %cst_8 {dimension_numbers = #tpu.dot_dimension_numbers<[1], [0], [0], [1], [0, 0, 1, 1], [], []>} : vector<256x128xbf16>, vector<128x64xbf16>, vector<256x64xf32> -> vector<256x64xf32>
    %c0_9 = arith.constant 0 : index
    %c0_10 = arith.constant 0 : index
    %11 = vector.load %arg5[%c0_9, %c0_10] : memref<1x64xf32, #tpu.memory_space<vmem>>, vector<1x64xf32>
    %12 = vector.broadcast %11 : vector<1x64xf32> to vector<256x64xf32>
    %13 = arith.addf %10, %12 : vector<256x64xf32>
    %cst_11 = arith.constant 0.000000e+00 : f32
    %14 = vector.broadcast %cst_11 : f32 to vector<256x64xf32>
    %15 = arith.maximumf %13, %14 : vector<256x64xf32>
    %16 = arith.truncf %15 : vector<256x64xf32> to vector<256x64xbf16>
    %c0_12 = arith.constant 0 : index
    %c0_13 = arith.constant 0 : index
    %17 = vector.load %arg6[%c0_12, %c0_13] : memref<64x128xbf16, #tpu.memory_space<vmem>>, vector<64x128xbf16>
    %cst_14 = arith.constant dense<0.000000e+00> : vector<256x128xf32>
    %18 = tpu.matmul %16, %17, %cst_14 {dimension_numbers = #tpu.dot_dimension_numbers<[1], [0], [0], [1], [0, 0, 1, 1], [], []>} : vector<256x64xbf16>, vector<64x128xbf16>, vector<256x128xf32> -> vector<256x128xf32>
    %c0_15 = arith.constant 0 : index
    %c0_16 = arith.constant 0 : index
    %19 = vector.load %arg7[%c0_15, %c0_16] : memref<1x128xf32, #tpu.memory_space<vmem>>, vector<1x128xf32>
    %20 = vector.broadcast %19 : vector<1x128xf32> to vector<256x128xf32>
    %21 = arith.addf %18, %20 : vector<256x128xf32>
    %cst_17 = arith.constant dense<0xFF800000> : vector<256xf32>
    %22 = vector.multi_reduction <maximumf>, %21, %cst_17 [1] : vector<256x128xf32> to vector<256xf32>
    %23 = vector.shape_cast %22 : vector<256xf32> to vector<256x1xf32>
    %24 = vector.broadcast %23 : vector<256x1xf32> to vector<256x128xf32>
    %25 = arith.subf %21, %24 : vector<256x128xf32>
    %26 = math.exp %25 : vector<256x128xf32>
    %cst_18 = arith.constant dense<0.000000e+00> : vector<256xf32>
    %27 = vector.multi_reduction <add>, %26, %cst_18 [1] : vector<256x128xf32> to vector<256xf32>
    %28 = vector.shape_cast %27 : vector<256xf32> to vector<256x1xf32>
    %29 = tpu.reciprocal %28 {approx = true} : vector<256x1xf32> -> vector<256x1xf32>
    %30 = vector.broadcast %29 : vector<256x1xf32> to vector<256x128xf32>
    %31 = arith.mulf %26, %30 : vector<256x128xf32>
    %c0_19 = arith.constant 0 : index
    %c0_20 = arith.constant 0 : index
    %32 = vector.load %arg8[%c0_19, %c0_20] : memref<256x128xf32, #tpu.memory_space<vmem>>, vector<256x128xf32>
    tpu.vector_store %arg8[%c0_19, %c0_20], %31 {strides = array<i32>} : memref<256x128xf32, #tpu.memory_space<vmem>>, vector<256x128xf32>,
    return
  }
  func.func @transform_0(%arg0: i32) -> (i32, i32) {
    %c0_i32 = arith.constant 0 : i32
    %c0_i32_0 = arith.constant 0 : i32
    return %arg0, %c0_i32 : i32, i32
  }
  func.func @transform_1(%arg0: i32) -> (i32, i32) {
    %c0_i32 = arith.constant 0 : i32
    %c0_i32_0 = arith.constant 0 : i32
    %c0_i32_1 = arith.constant 0 : i32
    return %c0_i32, %c0_i32_0 : i32, i32
  }
  func.func @transform_2(%arg0: i32) -> (i32, i32) {
    %c0_i32 = arith.constant 0 : i32
    %c0_i32_0 = arith.constant 0 : i32
    %c0_i32_1 = arith.constant 0 : i32
    return %c0_i32, %c0_i32_0 : i32, i32
  }
  func.func @transform_3(%arg0: i32) -> (i32, i32) {
    %c0_i32 = arith.constant 0 : i32
    %c0_i32_0 = arith.constant 0 : i32
    %c0_i32_1 = arith.constant 0 : i32
    return %c0_i32, %c0_i32_0 : i32, i32
  }
  func.func @transform_4(%arg0: i32) -> (i32, i32) {
    %c0_i32 = arith.constant 0 : i32
    %c0_i32_0 = arith.constant 0 : i32
    %c0_i32_1 = arith.constant 0 : i32
    return %c0_i32, %c0_i32_0 : i32, i32
  }
  func.func @transform_5(%arg0: i32) -> (i32, i32) {
    %c0_i32 = arith.constant 0 : i32
    %c0_i32_0 = arith.constant 0 : i32
    %c0_i32_1 = arith.constant 0 : i32
    return %c0_i32, %c0_i32_0 : i32, i32
  }
  func.func @transform_6(%arg0: i32) -> (i32, i32) {
    %c0_i32 = arith.constant 0 : i32
    %c0_i32_0 = arith.constant 0 : i32
    %c0_i32_1 = arith.constant 0 : i32
    return %c0_i32, %c0_i32_0 : i32, i32
  }
  func.func @transform_7(%arg0: i32) -> (i32, i32) {
    %c0_i32 = arith.constant 0 : i32
    %c0_i32_0 = arith.constant 0 : i32
    return %arg0, %c0_i32 : i32, i32
  }
}

</mosaic_0001>

<llo_original>
// kernel: tpu_custom_call.1
$region0: #{tpu_custom_call.1}
  #allocation0 [shape = 'u32[]', space=smem, size = 0x4, offset = 0x4, fixed_abs, tag = 'smem constant byte address 0x4 - core index']
  #allocation1 [shape = 'u32[72,128]{1,0:T(1,128)}', space=vmem, size = 0x9000, scoped, tag = 'internal scratch']
  %s0 = inlined_call_operand.vmem [shape: bf16[256,32], index: 0, kind: input, shape index: {}]
  %s1 = inlined_call_operand.vmem [shape: bf16[32,128], index: 1, kind: input, shape index: {}]
  %s2 = inlined_call_operand.vmem [shape: f32[1,128], index: 2, kind: input, shape index: {}]
  %s3 = inlined_call_operand.vmem [shape: bf16[128,64], index: 3, kind: input, shape index: {}]
  %s4 = inlined_call_operand.vmem [shape: f32[1,64], index: 4, kind: input, shape index: {}]
  %s5 = inlined_call_operand.vmem [shape: bf16[64,128], index: 5, kind: input, shape index: {}]
  %s6 = inlined_call_operand.vmem [shape: f32[1,128], index: 6, kind: input, shape index: {}]
  %s7 = inlined_call_operand.hbm [shape: f32[256,128], index: 7, kind: output, shape index: {}]
  %s8 = sld [smem:[#allocation0]]
  $region38: #{tpu_custom_call.1} parent=0
    _
  %s10 = ssub.s32 1, %s8
  %s11 = scalar_select 0, %s10, %s8
  $region1: #{tpu_custom_call.1} parent=0
    #allocation2 [shape = 'u8[131072]{0}', space=vmem, size = 0x20000, scoped, tag = 'output window, operand 0, single buffered']
    #allocation3 [shape = 's32[1]{0}', space=sflag, size = 0x4, scoped, tag = 'scoped memory for tpu_custom_call.1']
    %12 = vsyncpa [#allocation3], 0
    // Predicated region
    $region2: #{tpu_custom_call.1} parent=1 // pred_check
      _
    $region3: #{tpu_custom_call.1} parent=1 // pred_check_branch
      %14 = sbr.rel (0) target = $region5
    $region4: #{tpu_custom_call.1} parent=1 // pred_region
      _
    $region5: #{tpu_custom_call.1} parent=1 // pred_fallthru
      _
    // Predicated region
    $region6: #{tpu_custom_call.1} parent=1 // pred_check
      _
    $region7: #{tpu_custom_call.1} parent=1 // pred_check_branch
      %16 = sbr.rel (0) target = $region9
    $region8: #{tpu_custom_call.1} parent=1 // pred_region
      _
    $region9: #{tpu_custom_call.1} parent=1 // pred_fallthru
      _
    // Predicated region
    $region10: #{tpu_custom_call.1} parent=1 // pred_check
      _
    $region11: #{tpu_custom_call.1} parent=1 // pred_check_branch
      %18 = sbr.rel (0) target = $region13
    $region12: #{tpu_custom_call.1} parent=1 // pred_region
      _
    $region13: #{tpu_custom_call.1} parent=1 // pred_fallthru
      _
    // Predicated region
    $region14: #{tpu_custom_call.1} parent=1 // pred_check
      _
    $region15: #{tpu_custom_call.1} parent=1 // pred_check_branch
      %20 = sbr.rel (0) target = $region17
    $region16: #{tpu_custom_call.1} parent=1 // pred_region
      _
    $region17: #{tpu_custom_call.1} parent=1 // pred_fallthru
      _
    // Predicated region
    $region18: #{tpu_custom_call.1} parent=1 // pred_check
      _
    $region19: #{tpu_custom_call.1} parent=1 // pred_check_branch
      %22 = sbr.rel (0) target = $region21
    $region20: #{tpu_custom_call.1} parent=1 // pred_region
      _
    $region21: #{tpu_custom_call.1} parent=1 // pred_fallthru
      _
    // Predicated region
    $region22: #{tpu_custom_call.1} parent=1 // pred_check
      _
    $region23: #{tpu_custom_call.1} parent=1 // pred_check_branch
      %24 = sbr.rel (0) target = $region25
    $region24: #{tpu_custom_call.1} parent=1 // pred_region
      _
    $region25: #{tpu_custom_call.1} parent=1 // pred_fallthru
      _
    // Predicated region
    $region26: #{tpu_custom_call.1} parent=1 // pred_check
      _
    $region27: #{tpu_custom_call.1} parent=1 // pred_check_branch
      %26 = sbr.rel (0) target = $region29
    $region28: #{tpu_custom_call.1} parent=1 // pred_region
      _
    $region29: #{tpu_custom_call.1} parent=1 // pred_fallthru
      _
    %v28 = vld [vmem:[%s0] sm:$0xf]
    %v29 = vld [vmem:[%s0 + $0x4] sm:$0xf]
    %v30 = vld [vmem:[%s0 + $0x8] sm:$0xf]
    %v31 = vld [vmem:[%s0 + $0xc] sm:$0xf]
    %v32 = vld [vmem:[%s0 + $0x10] sm:$0xf]
    %v33 = vld [vmem:[%s0 + $0x14] sm:$0xf]
    %v34 = vld [vmem:[%s0 + $0x18] sm:$0xf]
    %v35 = vld [vmem:[%s0 + $0x1c] sm:$0xf]
    %v36 = vld [vmem:[%s0 + $0x20] sm:$0xf]
    %v37 = vld [vmem:[%s0 + $0x24] sm:$0xf]
    %v38 = vld [vmem:[%s0 + $0x28] sm:$0xf]
    %v39 = vld [vmem:[%s0 + $0x2c] sm:$0xf]
    %v40 = vld [vmem:[%s0 + $0x30] sm:$0xf]
    %v41 = vld [vmem:[%s0 + $0x34] sm:$0xf]
    %v42 = vld [vmem:[%s0 + $0x38] sm:$0xf]
    %v43 = vld [vmem:[%s0 + $0x3c] sm:$0xf]
    %v44 = vld [vmem:[%s0 + $0x40] sm:$0xf]
    %v45 = vld [vmem:[%s0 + $0x44] sm:$0xf]
    %v46 = vld [vmem:[%s0 + $0x48] sm:$0xf]
    %v47 = vld [vmem:[%s0 + $0x4c] sm:$0xf]
    %v48 = vld [vmem:[%s0 + $0x50] sm:$0xf]
    %v49 = vld [vmem:[%s0 + $0x54] sm:$0xf]
    %v50 = vld [vmem:[%s0 + $0x58] sm:$0xf]
    %v51 = vld [vmem:[%s0 + $0x5c] sm:$0xf]
    %v52 = vld [vmem:[%s0 + $0x60] sm:$0xf]
    %v53 = vld [vmem:[%s0 + $0x64] sm:$0xf]
    %v54 = vld [vmem:[%s0 + $0x68] sm:$0xf]
    %v55 = vld [vmem:[%s0 + $0x6c] sm:$0xf]
    %v56 = vld [vmem:[%s0 + $0x70] sm:$0xf]
    %v57 = vld [vmem:[%s0 + $0x74] sm:$0xf]
    %v58 = vld [vmem:[%s0 + $0x78] sm:$0xf]
    %v59 = vld [vmem:[%s0 + $0x7c] sm:$0xf]
    %v60 = vld [vmem:[%s1] sm:$0xf]
    %v61 = vld [vmem:[%s1 + $0x4] sm:$0xf]
    %v62 = vld [vmem:[%s1 + $0x8] sm:$0xf]
    %v63 = vld [vmem:[%s1 + $0xc] sm:$0xf]
    %v64 = vld [vmem:[%s2] sm:$0x1]
    %v66 = vperm.slane %v64, 0
    %v100 = vunpack.c.l.b16 %v28
    %v101 = vunpack.c.l.b16 %v29
    %v102 = vunpack.c.l.b16 %v30
    %v103 = vunpack.c.l.b16 %v31
    %v104 = vunpack.c.l.b16 %v32
    %v105 = vunpack.c.l.b16 %v33
    %v106 = vunpack.c.l.b16 %v34
    %v107 = vunpack.c.l.b16 %v35
    %v108 = vunpack.c.l.b16 %v36
    %v109 = vunpack.c.l.b16 %v37
    %v110 = vunpack.c.l.b16 %v38
    %v111 = vunpack.c.l.b16 %v39
    %v112 = vunpack.c.l.b16 %v40
    %v113 = vunpack.c.l.b16 %v41
    %v114 = vunpack.c.l.b16 %v42
    %v115 = vunpack.c.l.b16 %v43
    %v116 = vunpack.c.l.b16 %v44
    %v117 = vunpack.c.l.b16 %v45
    %v118 = vunpack.c.l.b16 %v46
    %v119 = vunpack.c.l.b16 %v47
    %v120 = vunpack.c.l.b16 %v48
    %v121 = vunpack.c.l.b16 %v49
    %v122 = vunpack.c.l.b16 %v50
    %v123 = vunpack.c.l.b16 %v51
    %v124 = vunpack.c.l.b16 %v52
    %v125 = vunpack.c.l.b16 %v53
    %v126 = vunpack.c.l.b16 %v54
    %v127 = vunpack.c.l.b16 %v55
    %v128 = vunpack.c.l.b16 %v56
    %v129 = vunpack.c.l.b16 %v57
    %v130 = vunpack.c.l.b16 %v58
    %v131 = vunpack.c.l.b16 %v59
    %v132 = vpack.c.b16 %v101, %v100
    %v133 = vpack.c.b16 %v103, %v102
    %v134 = vpack.c.b16 %v105, %v104
    %v135 = vpack.c.b16 %v107, %v106
    %v136 = vpack.c.b16 %v109, %v108
    %v137 = vpack.c.b16 %v111, %v110
    %v138 = vpack.c.b16 %v113, %v112
    %v139 = vpack.c.b16 %v115, %v114
    %v140 = vpack.c.b16 %v117, %v116
    %v141 = vpack.c.b16 %v119, %v118
    %v142 = vpack.c.b16 %v121, %v120
    %v143 = vpack.c.b16 %v123, %v122
    %v144 = vpack.c.b16 %v125, %v124
    %v145 = vpack.c.b16 %v127, %v126
    %v146 = vpack.c.b16 %v129, %v128
    %v147 = vpack.c.b16 %v131, %v130
    %v152 = vunpack.c.l.b16 %v60
    %v153 = vunpack.c.l.b16 %v61
    %v154 = vunpack.c.l.b16 %v62
    %v155 = vunpack.c.l.b16 %v63
    %v156 = vpack.c.b16 %v153, %v152
    %v157 = vpack.c.b16 %v155, %v154
    %vm160 = vcmask 261120
    %v162 = vsel %vm160, %v132, 0
    %v165 = vsel %vm160, %v133, 0
    %v168 = vsel %vm160, %v134, 0
    %v171 = vsel %vm160, %v135, 0
    %v174 = vsel %vm160, %v136, 0
    %v177 = vsel %vm160, %v137, 0
    %v180 = vsel %vm160, %v138, 0
    %v183 = vsel %vm160, %v139, 0
    %v186 = vsel %vm160, %v140, 0
    %v189 = vsel %vm160, %v141, 0
    %v192 = vsel %vm160, %v142, 0
    %v195 = vsel %vm160, %v143, 0
    %v198 = vsel %vm160, %v144, 0
    %v201 = vsel %vm160, %v145, 0
    %v204 = vsel %vm160, %v146, 0
    %v207 = vsel %vm160, %v147, 0
    %209 = vmatpush.bf16.msra.mxu0 0
    %210 = vmatpush.bf16.msra.mxu0 0
    %211 = vmatpush.bf16.msra.mxu0 0
    %212 = vmatpush.bf16.msra.mxu0 0
    %213 = vmatpush.bf16.msra.mxu0 0
    %214 = vmatpush.bf16.msra.mxu0 0
    %215 = vmatpush.bf16.msra.mxu0 %v157
    %216 = vmatpush.bf16.msra.mxu0 %v156
    %217 = vmatmul.bf16.gmra.mxu0 %v162
    %v218 = vpop.f32.mrf.mxu0
    %v219 = vadd.f32 %v66, %v218
    %v220 = vpop.f32.mrf.mxu0
    %v221 = vadd.f32 %v66, %v220
    %222 = vmatmul.bf16.gmra.mxu0 %v165
    %v223 = vpop.f32.mrf.mxu0
    %v224 = vadd.f32 %v66, %v223
    %v225 = vpop.f32.mrf.mxu0
    %v226 = vadd.f32 %v66, %v225
    %227 = vmatmul.bf16.gmra.mxu0 %v168
    %v228 = vpop.f32.mrf.mxu0
    %v229 = vadd.f32 %v66, %v228
    %v230 = vpop.f32.mrf.mxu0
    %v231 = vadd.f32 %v66, %v230
    %232 = vmatmul.bf16.gmra.mxu0 %v171
    %v233 = vpop.f32.mrf.mxu0
    %v234 = vadd.f32 %v66, %v233
    %v235 = vpop.f32.mrf.mxu0
    %v236 = vadd.f32 %v66, %v235
    %237 = vmatmul.bf16.gmra.mxu0 %v174
    %v238 = vpop.f32.mrf.mxu0
    %v239 = vadd.f32 %v66, %v238
    %v240 = vpop.f32.mrf.mxu0
    %v241 = vadd.f32 %v66, %v240
    %242 = vmatmul.bf16.gmra.mxu0 %v177
    %v243 = vpop.f32.mrf.mxu0
    %v244 = vadd.f32 %v66, %v243
    %v245 = vpop.f32.mrf.mxu0
    %v246 = vadd.f32 %v66, %v245
    %247 = vmatmul.bf16.gmra.mxu0 %v180
    %v248 = vpop.f32.mrf.mxu0
    %v249 = vadd.f32 %v66, %v248
    %v250 = vpop.f32.mrf.mxu0
    %v251 = vadd.f32 %v66, %v250
    %252 = vmatmul.bf16.gmra.mxu0 %v183
    %v253 = vpop.f32.mrf.mxu0
    %v254 = vadd.f32 %v66, %v253
    %v255 = vpop.f32.mrf.mxu0
    %v256 = vadd.f32 %v66, %v255
    %257 = vmatmul.bf16.gmra.mxu0 %v186
    %v258 = vpop.f32.mrf.mxu0
    %v259 = vadd.f32 %v66, %v258
    %v260 = vpop.f32.mrf.mxu0
    %v261 = vadd.f32 %v66, %v260
    %262 = vmatmul.bf16.gmra.mxu0 %v189
    %v263 = vpop.f32.mrf.mxu0
    %v264 = vadd.f32 %v66, %v263
    %v265 = vpop.f32.mrf.mxu0
    %v266 = vadd.f32 %v66, %v265
    %267 = vmatmul.bf16.gmra.mxu0 %v192
    %v268 = vpop.f32.mrf.mxu0
    %v269 = vadd.f32 %v66, %v268
    %v270 = vpop.f32.mrf.mxu0
    %v271 = vadd.f32 %v66, %v270
    %272 = vmatmul.bf16.gmra.mxu0 %v195
    %v273 = vpop.f32.mrf.mxu0
    %v274 = vadd.f32 %v66, %v273
    %v275 = vpop.f32.mrf.mxu0
    %v276 = vadd.f32 %v66, %v275
    %277 = vmatmul.bf16.gmra.mxu0 %v198
    %v278 = vpop.f32.mrf.mxu0
    %v279 = vadd.f32 %v66, %v278
    %v280 = vpop.f32.mrf.mxu0
    %v281 = vadd.f32 %v66, %v280
    %282 = vmatmul.bf16.gmra.mxu0 %v201
    %v283 = vpop.f32.mrf.mxu0
    %v284 = vadd.f32 %v66, %v283
    %v285 = vpop.f32.mrf.mxu0
    %v286 = vadd.f32 %v66, %v285
    %287 = vmatmul.bf16.gmra.mxu0 %v204
    %v288 = vpop.f32.mrf.mxu0
    %v289 = vadd.f32 %v66, %v288
    %v290 = vpop.f32.mrf.mxu0
    %v291 = vadd.f32 %v66, %v290
    %292 = vmatmul.bf16.gmra.mxu0 %v207
    %v293 = vpop.f32.mrf.mxu0
    %v294 = vadd.f32 %v66, %v293
    %v295 = vpop.f32.mrf.mxu0
    %v296 = vadd.f32 %v66, %v295
    %297 = vdwg.mxu0
    %v298 = vmax.f32 %v219, 0.0
    %v299 = vmax.f32 %v221, 0.0
    %v300 = vmax.f32 %v224, 0.0
    %v301 = vmax.f32 %v226, 0.0
    %v302 = vmax.f32 %v229, 0.0
    %v303 = vmax.f32 %v231, 0.0
    %v304 = vmax.f32 %v234, 0.0
    %v305 = vmax.f32 %v236, 0.0
    %v306 = vmax.f32 %v239, 0.0
    %v307 = vmax.f32 %v241, 0.0
    %v308 = vmax.f32 %v244, 0.0
    %v309 = vmax.f32 %v246, 0.0
    %v310 = vmax.f32 %v249, 0.0
    %v311 = vmax.f32 %v251, 0.0
    %v312 = vmax.f32 %v254, 0.0
    %v313 = vmax.f32 %v256, 0.0
    %v314 = vmax.f32 %v259, 0.0
    %v315 = vmax.f32 %v261, 0.0
    %v316 = vmax.f32 %v264, 0.0
    %v317 = vmax.f32 %v266, 0.0
    %v318 = vmax.f32 %v269, 0.0
    %v319 = vmax.f32 %v271, 0.0
    %v320 = vmax.f32 %v274, 0.0
    %v321 = vmax.f32 %v276, 0.0
    %v322 = vmax.f32 %v279, 0.0
    %v323 = vmax.f32 %v281, 0.0
    %v324 = vmax.f32 %v284, 0.0
    %v325 = vmax.f32 %v286, 0.0
    %v326 = vmax.f32 %v289, 0.0
    %v327 = vmax.f32 %v291, 0.0
    %v328 = vmax.f32 %v294, 0.0
    %v329 = vmax.f32 %v296, 0.0
    %v330 = vpack.c.bf16 %v299, %v298
    %v331 = vpack.c.bf16 %v301, %v300
    %v332 = vpack.c.bf16 %v303, %v302
    %v333 = vpack.c.bf16 %v305, %v304
    %v334 = vpack.c.bf16 %v307, %v306
    %v335 = vpack.c.bf16 %v309, %v308
    %v336 = vpack.c.bf16 %v311, %v310
    %v337 = vpack.c.bf16 %v313, %v312
    %v338 = vpack.c.bf16 %v315, %v314
    %v339 = vpack.c.bf16 %v317, %v316
    %v340 = vpack.c.bf16 %v319, %v318
    %v341 = vpack.c.bf16 %v321, %v320
    %v342 = vpack.c.bf16 %v323, %v322
    %v343 = vpack.c.bf16 %v325, %v324
    %v344 = vpack.c.bf16 %v327, %v326
    %v345 = vpack.c.bf16 %v329, %v328
    %v346 = vld [vmem:[%s3] sm:$0xf]
    %v347 = vld [vmem:[%s3 + $0x4] sm:$0xf]
    %v348 = vld [vmem:[%s3 + $0x8] sm:$0xf]
    %v349 = vld [vmem:[%s3 + $0xc] sm:$0xf]
    %v350 = vld [vmem:[%s3 + $0x10] sm:$0xf]
    %v351 = vld [vmem:[%s3 + $0x14] sm:$0xf]
    %v352 = vld [vmem:[%s3 + $0x18] sm:$0xf]
    %v353 = vld [vmem:[%s3 + $0x1c] sm:$0xf]
    %v354 = vld [vmem:[%s3 + $0x20] sm:$0xf]
    %v355 = vld [vmem:[%s3 + $0x24] sm:$0xf]
    %v356 = vld [vmem:[%s3 + $0x28] sm:$0xf]
    %v357 = vld [vmem:[%s3 + $0x2c] sm:$0xf]
    %v358 = vld [vmem:[%s3 + $0x30] sm:$0xf]
    %v359 = vld [vmem:[%s3 + $0x34] sm:$0xf]
    %v360 = vld [vmem:[%s3 + $0x38] sm:$0xf]
    %v361 = vld [vmem:[%s3 + $0x3c] sm:$0xf]
    %v362 = vld [vmem:[%s4] sm:$0x1]
    %v364 = vperm.slane %v362, 0
    %v382 = vunpack.c.l.b16 %v346
    %v383 = vunpack.c.l.b16 %v347
    %v384 = vunpack.c.l.b16 %v348
    %v385 = vunpack.c.l.b16 %v349
    %v386 = vunpack.c.l.b16 %v350
    %v387 = vunpack.c.l.b16 %v351
    %v388 = vunpack.c.l.b16 %v352
    %v389 = vunpack.c.l.b16 %v353
    %v390 = vunpack.c.l.b16 %v354
    %v391 = vunpack.c.l.b16 %v355
    %v392 = vunpack.c.l.b16 %v356
    %v393 = vunpack.c.l.b16 %v357
    %v394 = vunpack.c.l.b16 %v358
    %v395 = vunpack.c.l.b16 %v359
    %v396 = vunpack.c.l.b16 %v360
    %v397 = vunpack.c.l.b16 %v361
    %v398 = vpack.c.b16 %v383, %v382
    %v399 = vpack.c.b16 %v385, %v384
    %v400 = vpack.c.b16 %v387, %v386
    %v401 = vpack.c.b16 %v389, %v388
    %v402 = vpack.c.b16 %v391, %v390
    %v403 = vpack.c.b16 %v393, %v392
    %v404 = vpack.c.b16 %v395, %v394
    %v405 = vpack.c.b16 %v397, %v396
    %414 = vmatpush.bf16.msra.mxu0 %v405
    %415 = vmatpush.bf16.msra.mxu0 %v404
    %416 = vmatpush.bf16.msra.mxu0 %v403
    %417 = vmatpush.bf16.msra.mxu0 %v402
    %418 = vmatpush.bf16.msra.mxu0 %v401
    %419 = vmatpush.bf16.msra.mxu0 %v400
    %420 = vmatpush.bf16.msra.mxu0 %v399
    %421 = vmatpush.bf16.msra.mxu0 %v398
    %422 = vmatmul.bf16.gmra.mxu0 %v330
    %v423 = vpop.f32.mrf.mxu0
    %v424 = vadd.f32 %v364, %v423
    %v425 = vpop.f32.mrf.mxu0
    %v426 = vadd.f32 %v364, %v425
    %427 = vmatmul.bf16.gmra.mxu0 %v331
    %v428 = vpop.f32.mrf.mxu0
    %v429 = vadd.f32 %v364, %v428
    %v430 = vpop.f32.mrf.mxu0
    %v431 = vadd.f32 %v364, %v430
    %432 = vmatmul.bf16.gmra.mxu0 %v332
    %v433 = vpop.f32.mrf.mxu0
    %v434 = vadd.f32 %v364, %v433
    %v435 = vpop.f32.mrf.mxu0
    %v436 = vadd.f32 %v364, %v435
    %437 = vmatmul.bf16.gmra.mxu0 %v333
    %v438 = vpop.f32.mrf.mxu0
    %v439 = vadd.f32 %v364, %v438
    %v440 = vpop.f32.mrf.mxu0
    %v441 = vadd.f32 %v364, %v440
    %442 = vmatmul.bf16.gmra.mxu0 %v334
    %v443 = vpop.f32.mrf.mxu0
    %v444 = vadd.f32 %v364, %v443
    %v445 = vpop.f32.mrf.mxu0
    %v446 = vadd.f32 %v364, %v445
    %447 = vmatmul.bf16.gmra.mxu0 %v335
    %v448 = vpop.f32.mrf.mxu0
    %v449 = vadd.f32 %v364, %v448
    %v450 = vpop.f32.mrf.mxu0
    %v451 = vadd.f32 %v364, %v450
    %452 = vmatmul.bf16.gmra.mxu0 %v336
    %v453 = vpop.f32.mrf.mxu0
    %v454 = vadd.f32 %v364, %v453
    %v455 = vpop.f32.mrf.mxu0
    %v456 = vadd.f32 %v364, %v455
    %457 = vmatmul.bf16.gmra.mxu0 %v337
    %v458 = vpop.f32.mrf.mxu0
    %v459 = vadd.f32 %v364, %v458
    %v460 = vpop.f32.mrf.mxu0
    %v461 = vadd.f32 %v364, %v460
    %462 = vmatmul.bf16.gmra.mxu0 %v338
    %v463 = vpop.f32.mrf.mxu0
    %v464 = vadd.f32 %v364, %v463
    %v465 = vpop.f32.mrf.mxu0
    %v466 = vadd.f32 %v364, %v465
    %467 = vmatmul.bf16.gmra.mxu0 %v339
    %v468 = vpop.f32.mrf.mxu0
    %v469 = vadd.f32 %v364, %v468
    %v470 = vpop.f32.mrf.mxu0
    %v471 = vadd.f32 %v364, %v470
    %472 = vmatmul.bf16.gmra.mxu0 %v340
    %v473 = vpop.f32.mrf.mxu0
    %v474 = vadd.f32 %v364, %v473
    %v475 = vpop.f32.mrf.mxu0
    %v476 = vadd.f32 %v364, %v475
    %477 = vmatmul.bf16.gmra.mxu0 %v341
    %v478 = vpop.f32.mrf.mxu0
    %v479 = vadd.f32 %v364, %v478
    %v480 = vpop.f32.mrf.mxu0
    %v481 = vadd.f32 %v364, %v480
    %482 = vmatmul.bf16.gmra.mxu0 %v342
    %v483 = vpop.f32.mrf.mxu0
    %v484 = vadd.f32 %v364, %v483
    %v485 = vpop.f32.mrf.mxu0
    %v486 = vadd.f32 %v364, %v485
    %487 = vmatmul.bf16.gmra.mxu0 %v343
    %v488 = vpop.f32.mrf.mxu0
    %v489 = vadd.f32 %v364, %v488
    %v490 = vpop.f32.mrf.mxu0
    %v491 = vadd.f32 %v364, %v490
    %492 = vmatmul.bf16.gmra.mxu0 %v344
    %v493 = vpop.f32.mrf.mxu0
    %v494 = vadd.f32 %v364, %v493
    %v495 = vpop.f32.mrf.mxu0
    %v496 = vadd.f32 %v364, %v495
    %497 = vmatmul.bf16.gmra.mxu0 %v345
    %v498 = vpop.f32.mrf.mxu0
    %v499 = vadd.f32 %v364, %v498
    %v500 = vpop.f32.mrf.mxu0
    %v501 = vadd.f32 %v364, %v500
    %502 = vdwg.mxu0
    %v503 = vmax.f32 %v424, 0.0
    %v504 = vmax.f32 %v426, 0.0
    %v505 = vmax.f32 %v429, 0.0
    %v506 = vmax.f32 %v431, 0.0
    %v507 = vmax.f32 %v434, 0.0
    %v508 = vmax.f32 %v436, 0.0
    %v509 = vmax.f32 %v439, 0.0
    %v510 = vmax.f32 %v441, 0.0
    %v511 = vmax.f32 %v444, 0.0
    %v512 = vmax.f32 %v446, 0.0
    %v513 = vmax.f32 %v449, 0.0
    %v514 = vmax.f32 %v451, 0.0
    %v515 = vmax.f32 %v454, 0.0
    %v516 = vmax.f32 %v456, 0.0
    %v517 = vmax.f32 %v459, 0.0
    %v518 = vmax.f32 %v461, 0.0
    %v519 = vmax.f32 %v464, 0.0
    %v520 = vmax.f32 %v466, 0.0
    %v521 = vmax.f32 %v469, 0.0
    %v522 = vmax.f32 %v471, 0.0
    %v523 = vmax.f32 %v474, 0.0
    %v524 = vmax.f32 %v476, 0.0
    %v525 = vmax.f32 %v479, 0.0
    %v526 = vmax.f32 %v481, 0.0
    %v527 = vmax.f32 %v484, 0.0
    %v528 = vmax.f32 %v486, 0.0
    %v529 = vmax.f32 %v489, 0.0
    %v530 = vmax.f32 %v491, 0.0
    %v531 = vmax.f32 %v494, 0.0
    %v532 = vmax.f32 %v496, 0.0
    %v533 = vmax.f32 %v499, 0.0
    %v534 = vmax.f32 %v501, 0.0
    %v535 = vpack.c.bf16 %v504, %v503
    %v536 = vpack.c.bf16 %v506, %v505
    %v537 = vpack.c.bf16 %v508, %v507
    %v538 = vpack.c.bf16 %v510, %v509
    %v539 = vpack.c.bf16 %v512, %v511
    %v540 = vpack.c.bf16 %v514, %v513
    %v541 = vpack.c.bf16 %v516, %v515
    %v542 = vpack.c.bf16 %v518, %v517
    %v543 = vpack.c.bf16 %v520, %v519
    %v544 = vpack.c.bf16 %v522, %v521
    %v545 = vpack.c.bf16 %v524, %v523
    %v546 = vpack.c.bf16 %v526, %v525
    %v547 = vpack.c.bf16 %v528, %v527
    %v548 = vpack.c.bf16 %v530, %v529
    %v549 = vpack.c.bf16 %v532, %v531
    %v550 = vpack.c.bf16 %v534, %v533
    %v551 = vld [vmem:[%s5] sm:$0xf]
    %v552 = vld [vmem:[%s5 + $0x4] sm:$0xf]
    %v553 = vld [vmem:[%s5 + $0x8] sm:$0xf]
    %v554 = vld [vmem:[%s5 + $0xc] sm:$0xf]
    %v555 = vld [vmem:[%s5 + $0x10] sm:$0xf]
    %v556 = vld [vmem:[%s5 + $0x14] sm:$0xf]
    %v557 = vld [vmem:[%s5 + $0x18] sm:$0xf]
    %v558 = vld [vmem:[%s5 + $0x1c] sm:$0xf]
    %v559 = vld [vmem:[%s6] sm:$0x1]
    %v561 = vperm.slane %v559, 0
    %v571 = vunpack.c.l.b16 %v551
    %v572 = vunpack.c.l.b16 %v552
    %v573 = vunpack.c.l.b16 %v553
    %v574 = vunpack.c.l.b16 %v554
    %v575 = vunpack.c.l.b16 %v555
    %v576 = vunpack.c.l.b16 %v556
    %v577 = vunpack.c.l.b16 %v557
    %v578 = vunpack.c.l.b16 %v558
    %v579 = vpack.c.b16 %v572, %v571
    %v580 = vpack.c.b16 %v574, %v573
    %v581 = vpack.c.b16 %v576, %v575
    %v582 = vpack.c.b16 %v578, %v577
    %vm587 = vcmask 523264
    %v589 = vsel %vm587, %v535, 0
    %v592 = vsel %vm587, %v536, 0
    %v595 = vsel %vm587, %v537, 0
    %v598 = vsel %vm587, %v538, 0
    %v601 = vsel %vm587, %v539, 0
    %v604 = vsel %vm587, %v540, 0
    %v607 = vsel %vm587, %v541, 0
    %v610 = vsel %vm587, %v542, 0
    %v613 = vsel %vm587, %v543, 0
    %v616 = vsel %vm587, %v544, 0
    %v619 = vsel %vm587, %v545, 0
    %v622 = vsel %vm587, %v546, 0
    %v625 = vsel %vm587, %v547, 0
    %v628 = vsel %vm587, %v548, 0
    %v631 = vsel %vm587, %v549, 0
    %v634 = vsel %vm587, %v550, 0
    %636 = vmatpush.bf16.msra.mxu0 0
    %637 = vmatpush.bf16.msra.mxu0 0
    %638 = vmatpush.bf16.msra.mxu0 0
    %639 = vmatpush.bf16.msra.mxu0 0
    %640 = vmatpush.bf16.msra.mxu0 %v582
    %641 = vmatpush.bf16.msra.mxu0 %v581
    %642 = vmatpush.bf16.msra.mxu0 %v580
    %643 = vmatpush.bf16.msra.mxu0 %v579
    %644 = vmatmul.bf16.gmra.mxu0 %v589
    %v645 = vpop.f32.mrf.mxu0
    %v646 = vadd.f32 %v561, %v645
    %v647 = vpop.f32.mrf.mxu0
    %v648 = vadd.f32 %v561, %v647
    %649 = vmatmul.bf16.gmra.mxu0 %v592
    %v650 = vpop.f32.mrf.mxu0
    %v651 = vadd.f32 %v561, %v650
    %v652 = vpop.f32.mrf.mxu0
    %v653 = vadd.f32 %v561, %v652
    %654 = vmatmul.bf16.gmra.mxu0 %v595
    %v655 = vpop.f32.mrf.mxu0
    %v656 = vadd.f32 %v561, %v655
    %v657 = vpop.f32.mrf.mxu0
    %v658 = vadd.f32 %v561, %v657
    %659 = vmatmul.bf16.gmra.mxu0 %v598
    %v660 = vpop.f32.mrf.mxu0
    %v661 = vadd.f32 %v561, %v660
    %v662 = vpop.f32.mrf.mxu0
    %v663 = vadd.f32 %v561, %v662
    %664 = vmatmul.bf16.gmra.mxu0 %v601
    %v665 = vpop.f32.mrf.mxu0
    %v666 = vadd.f32 %v561, %v665
    %v667 = vpop.f32.mrf.mxu0
    %v668 = vadd.f32 %v561, %v667
    %669 = vmatmul.bf16.gmra.mxu0 %v604
    %v670 = vpop.f32.mrf.mxu0
    %v671 = vadd.f32 %v561, %v670
    %v672 = vpop.f32.mrf.mxu0
    %v673 = vadd.f32 %v561, %v672
    %674 = vmatmul.bf16.gmra.mxu0 %v607
    %v675 = vpop.f32.mrf.mxu0
    %v676 = vadd.f32 %v561, %v675
    %v677 = vpop.f32.mrf.mxu0
    %v678 = vadd.f32 %v561, %v677
    %679 = vmatmul.bf16.gmra.mxu0 %v610
    %v680 = vpop.f32.mrf.mxu0
    %v681 = vadd.f32 %v561, %v680
    %v682 = vpop.f32.mrf.mxu0
    %v683 = vadd.f32 %v561, %v682
    %684 = vmatmul.bf16.gmra.mxu0 %v613
    %v685 = vpop.f32.mrf.mxu0
    %v686 = vadd.f32 %v561, %v685
    %v687 = vpop.f32.mrf.mxu0
    %v688 = vadd.f32 %v561, %v687
    %689 = vmatmul.bf16.gmra.mxu0 %v616
    %v690 = vpop.f32.mrf.mxu0
    %v691 = vadd.f32 %v561, %v690
    %v692 = vpop.f32.mrf.mxu0
    %v693 = vadd.f32 %v561, %v692
    %694 = vmatmul.bf16.gmra.mxu0 %v619
    %v695 = vpop.f32.mrf.mxu0
    %v696 = vadd.f32 %v561, %v695
    %v697 = vpop.f32.mrf.mxu0
    %v698 = vadd.f32 %v561, %v697
    %699 = vmatmul.bf16.gmra.mxu0 %v622
    %v700 = vpop.f32.mrf.mxu0
    %v701 = vadd.f32 %v561, %v700
    %v702 = vpop.f32.mrf.mxu0
    %v703 = vadd.f32 %v561, %v702
    %704 = vmatmul.bf16.gmra.mxu0 %v625
    %v705 = vpop.f32.mrf.mxu0
    %v706 = vadd.f32 %v561, %v705
    %v707 = vpop.f32.mrf.mxu0
    %v708 = vadd.f32 %v561, %v707
    %709 = vmatmul.bf16.gmra.mxu0 %v628
    %v710 = vpop.f32.mrf.mxu0
    %v711 = vadd.f32 %v561, %v710
    %v712 = vpop.f32.mrf.mxu0
    %v713 = vadd.f32 %v561, %v712
    %714 = vmatmul.bf16.gmra.mxu0 %v631
    %v715 = vpop.f32.mrf.mxu0
    %v716 = vadd.f32 %v561, %v715
    %v717 = vpop.f32.mrf.mxu0
    %v718 = vadd.f32 %v561, %v717
    %719 = vmatmul.bf16.gmra.mxu0 %v634
    %v720 = vpop.f32.mrf.mxu0
    %v721 = vadd.f32 %v561, %v720
    %v722 = vpop.f32.mrf.mxu0
    %v723 = vadd.f32 %v561, %v722
    %724 = vdwg.mxu0
    %725 = vmax.xlane.f32.xlu0 %v646
    %v726 = vpop.xlane.xlu0 %725
    %727 = vmax.xlane.f32.xlu0 %v648
    %v728 = vpop.xlane.xlu0 %727
    %729 = vmax.xlane.f32.xlu0 %v651
    %v730 = vpop.xlane.xlu0 %729
    %731 = vmax.xlane.f32.xlu0 %v653
    %v732 = vpop.xlane.xlu0 %731
    %733 = vmax.xlane.f32.xlu0 %v656
    %v734 = vpop.xlane.xlu0 %733
    %735 = vmax.xlane.f32.xlu0 %v658
    %v736 = vpop.xlane.xlu0 %735
    %737 = vmax.xlane.f32.xlu0 %v661
    %v738 = vpop.xlane.xlu0 %737
    %739 = vmax.xlane.f32.xlu0 %v663
    %v740 = vpop.xlane.xlu0 %739
    %741 = vmax.xlane.f32.xlu0 %v666
    %v742 = vpop.xlane.xlu0 %741
    %743 = vmax.xlane.f32.xlu0 %v668
    %v744 = vpop.xlane.xlu0 %743
    %745 = vmax.xlane.f32.xlu0 %v671
    %v746 = vpop.xlane.xlu0 %745
    %747 = vmax.xlane.f32.xlu0 %v673
    %v748 = vpop.xlane.xlu0 %747
    %749 = vmax.xlane.f32.xlu0 %v676
    %v750 = vpop.xlane.xlu0 %749
    %751 = vmax.xlane.f32.xlu0 %v678
    %v752 = vpop.xlane.xlu0 %751
    %753 = vmax.xlane.f32.xlu0 %v681
    %v754 = vpop.xlane.xlu0 %753
    %755 = vmax.xlane.f32.xlu0 %v683
    %v756 = vpop.xlane.xlu0 %755
    %757 = vmax.xlane.f32.xlu0 %v686
    %v758 = vpop.xlane.xlu0 %757
    %759 = vmax.xlane.f32.xlu0 %v688
    %v760 = vpop.xlane.xlu0 %759
    %761 = vmax.xlane.f32.xlu0 %v691
    %v762 = vpop.xlane.xlu0 %761
    %763 = vmax.xlane.f32.xlu0 %v693
    %v764 = vpop.xlane.xlu0 %763
    %765 = vmax.xlane.f32.xlu0 %v696
    %v766 = vpop.xlane.xlu0 %765
    %767 = vmax.xlane.f32.xlu0 %v698
    %v768 = vpop.xlane.xlu0 %767
    %769 = vmax.xlane.f32.xlu0 %v701
    %v770 = vpop.xlane.xlu0 %769
    %771 = vmax.xlane.f32.xlu0 %v703
    %v772 = vpop.xlane.xlu0 %771
    %773 = vmax.xlane.f32.xlu0 %v706
    %v774 = vpop.xlane.xlu0 %773
    %775 = vmax.xlane.f32.xlu0 %v708
    %v776 = vpop.xlane.xlu0 %775
    %777 = vmax.xlane.f32.xlu0 %v711
    %v778 = vpop.xlane.xlu0 %777
    %779 = vmax.xlane.f32.xlu0 %v713
    %v780 = vpop.xlane.xlu0 %779
    %781 = vmax.xlane.f32.xlu0 %v716
    %v782 = vpop.xlane.xlu0 %781
    %783 = vmax.xlane.f32.xlu0 %v718
    %v784 = vpop.xlane.xlu0 %783
    %785 = vmax.xlane.f32.xlu0 %v721
    %v786 = vpop.xlane.xlu0 %785
    %787 = vmax.xlane.f32.xlu0 %v723
    %v788 = vpop.xlane.xlu0 %787
    %v789 = vsub.f32 %v646, %v726
    %v790 = vsub.f32 %v648, %v728
    %v791 = vsub.f32 %v651, %v730
    %v792 = vsub.f32 %v653, %v732
    %v793 = vsub.f32 %v656, %v734
    %v794 = vsub.f32 %v658, %v736
    %v795 = vsub.f32 %v661, %v738
    %v796 = vsub.f32 %v663, %v740
    %v797 = vsub.f32 %v666, %v742
    %v798 = vsub.f32 %v668, %v744
    %v799 = vsub.f32 %v671, %v746
    %v800 = vsub.f32 %v673, %v748
    %v801 = vsub.f32 %v676, %v750
    %v802 = vsub.f32 %v678, %v752
    %v803 = vsub.f32 %v681, %v754
    %v804 = vsub.f32 %v683, %v756
    %v805 = vsub.f32 %v686, %v758
    %v806 = vsub.f32 %v688, %v760
    %v807 = vsub.f32 %v691, %v762
    %v808 = vsub.f32 %v693, %v764
    %v809 = vsub.f32 %v696, %v766
    %v810 = vsub.f32 %v698, %v768
    %v811 = vsub.f32 %v701, %v770
    %v812 = vsub.f32 %v703, %v772
    %v813 = vsub.f32 %v706, %v774
    %v814 = vsub.f32 %v708, %v776
    %v815 = vsub.f32 %v711, %v778
    %v816 = vsub.f32 %v713, %v780
    %v817 = vsub.f32 %v716, %v782
    %v818 = vsub.f32 %v718, %v784
    %v819 = vsub.f32 %v721, %v786
    %v820 = vsub.f32 %v723, %v788
    %v821 = vmul.f32 %v789, 1.442695
    %v822 = vpow.pop %v821
    %v823 = vmul.f32 %v790, 1.442695
    %v824 = vpow.pop %v823
    %v825 = vmul.f32 %v791, 1.442695
    %v826 = vpow.pop %v825
    %v827 = vmul.f32 %v792, 1.442695
    %v828 = vpow.pop %v827
    %v829 = vmul.f32 %v793, 1.442695
    %v830 = vpow.pop %v829
    %v831 = vmul.f32 %v794, 1.442695
    %v832 = vpow.pop %v831
    %v833 = vmul.f32 %v795, 1.442695
    %v834 = vpow.pop %v833
    %v835 = vmul.f32 %v796, 1.442695
    %v836 = vpow.pop %v835
    %v837 = vmul.f32 %v797, 1.442695
    %v838 = vpow.pop %v837
    %v839 = vmul.f32 %v798, 1.442695
    %v840 = vpow.pop %v839
    %v841 = vmul.f32 %v799, 1.442695
    %v842 = vpow.pop %v841
    %v843 = vmul.f32 %v800, 1.442695
    %v844 = vpow.pop %v843
    %v845 = vmul.f32 %v801, 1.442695
    %v846 = vpow.pop %v845
    %v847 = vmul.f32 %v802, 1.442695
    %v848 = vpow.pop %v847
    %v849 = vmul.f32 %v803, 1.442695
    %v850 = vpow.pop %v849
    %v851 = vmul.f32 %v804, 1.442695
    %v852 = vpow.pop %v851
    %v853 = vmul.f32 %v805, 1.442695
    %v854 = vpow.pop %v853
    %v855 = vmul.f32 %v806, 1.442695
    %v856 = vpow.pop %v855
    %v857 = vmul.f32 %v807, 1.442695
    %v858 = vpow.pop %v857
    %v859 = vmul.f32 %v808, 1.442695
    %v860 = vpow.pop %v859
    %v861 = vmul.f32 %v809, 1.442695
    %v862 = vpow.pop %v861
    %v863 = vmul.f32 %v810, 1.442695
    %v864 = vpow.pop %v863
    %v865 = vmul.f32 %v811, 1.442695
    %v866 = vpow.pop %v865
    %v867 = vmul.f32 %v812, 1.442695
    %v868 = vpow.pop %v867
    %v869 = vmul.f32 %v813, 1.442695
    %v870 = vpow.pop %v869
    %v871 = vmul.f32 %v814, 1.442695
    %v872 = vpow.pop %v871
    %v873 = vmul.f32 %v815, 1.442695
    %v874 = vpow.pop %v873
    %v875 = vmul.f32 %v816, 1.442695
    %v876 = vpow.pop %v875
    %v877 = vmul.f32 %v817, 1.442695
    %v878 = vpow.pop %v877
    %v879 = vmul.f32 %v818, 1.442695
    %v880 = vpow.pop %v879
    %v881 = vmul.f32 %v819, 1.442695
    %v882 = vpow.pop %v881
    %v883 = vmul.f32 %v820, 1.442695
    %v884 = vpow.pop %v883
    %885 = vadd.xlane.f32.xlu0 %v822
    %v886 = vpop.xlane.xlu0 %885
    %887 = vadd.xlane.f32.xlu0 %v824
    %v888 = vpop.xlane.xlu0 %887
    %889 = vadd.xlane.f32.xlu0 %v826
    %v890 = vpop.xlane.xlu0 %889
    %891 = vadd.xlane.f32.xlu0 %v828
    %v892 = vpop.xlane.xlu0 %891
    %893 = vadd.xlane.f32.xlu0 %v830
    %v894 = vpop.xlane.xlu0 %893
    %895 = vadd.xlane.f32.xlu0 %v832
    %v896 = vpop.xlane.xlu0 %895
    %897 = vadd.xlane.f32.xlu0 %v834
    %v898 = vpop.xlane.xlu0 %897
    %899 = vadd.xlane.f32.xlu0 %v836
    %v900 = vpop.xlane.xlu0 %899
    %901 = vadd.xlane.f32.xlu0 %v838
    %v902 = vpop.xlane.xlu0 %901
    %903 = vadd.xlane.f32.xlu0 %v840
    %v904 = vpop.xlane.xlu0 %903
    %905 = vadd.xlane.f32.xlu0 %v842
    %v906 = vpop.xlane.xlu0 %905
    %907 = vadd.xlane.f32.xlu0 %v844
    %v908 = vpop.xlane.xlu0 %907
    %909 = vadd.xlane.f32.xlu0 %v846
    %v910 = vpop.xlane.xlu0 %909
    %911 = vadd.xlane.f32.xlu0 %v848
    %v912 = vpop.xlane.xlu0 %911
    %913 = vadd.xlane.f32.xlu0 %v850
    %v914 = vpop.xlane.xlu0 %913
    %915 = vadd.xlane.f32.xlu0 %v852
    %v916 = vpop.xlane.xlu0 %915
    %917 = vadd.xlane.f32.xlu0 %v854
    %v918 = vpop.xlane.xlu0 %917
    %919 = vadd.xlane.f32.xlu0 %v856
    %v920 = vpop.xlane.xlu0 %919
    %921 = vadd.xlane.f32.xlu0 %v858
    %v922 = vpop.xlane.xlu0 %921
    %923 = vadd.xlane.f32.xlu0 %v860
    %v924 = vpop.xlane.xlu0 %923
    %925 = vadd.xlane.f32.xlu0 %v862
    %v926 = vpop.xlane.xlu0 %925
    %927 = vadd.xlane.f32.xlu0 %v864
    %v928 = vpop.xlane.xlu0 %927
    %929 = vadd.xlane.f32.xlu0 %v866
    %v930 = vpop.xlane.xlu0 %929
    %931 = vadd.xlane.f32.xlu0 %v868
    %v932 = vpop.xlane.xlu0 %931
    %933 = vadd.xlane.f32.xlu0 %v870
    %v934 = vpop.xlane.xlu0 %933
    %935 = vadd.xlane.f32.xlu0 %v872
    %v936 = vpop.xlane.xlu0 %935
    %937 = vadd.xlane.f32.xlu0 %v874
    %v938 = vpop.xlane.xlu0 %937
    %939 = vadd.xlane.f32.xlu0 %v876
    %v940 = vpop.xlane.xlu0 %939
    %941 = vadd.xlane.f32.xlu0 %v878
    %v942 = vpop.xlane.xlu0 %941
    %943 = vadd.xlane.f32.xlu0 %v880
    %v944 = vpop.xlane.xlu0 %943
    %945 = vadd.xlane.f32.xlu0 %v882
    %v946 = vpop.xlane.xlu0 %945
    %947 = vadd.xlane.f32.xlu0 %v884
    %v948 = vpop.xlane.xlu0 %947
    %v949 = vrcp.pop %v886
    %v950 = vrcp.pop %v888
    %v951 = vrcp.pop %v890
    %v952 = vrcp.pop %v892
    %v953 = vrcp.pop %v894
    %v954 = vrcp.pop %v896
    %v955 = vrcp.pop %v898
    %v956 = vrcp.pop %v900
    %v957 = vrcp.pop %v902
    %v958 = vrcp.pop %v904
    %v959 = vrcp.pop %v906
    %v960 = vrcp.pop %v908
    %v961 = vrcp.pop %v910
    %v962 = vrcp.pop %v912
    %v963 = vrcp.pop %v914
    %v964 = vrcp.pop %v916
    %v965 = vrcp.pop %v918
    %v966 = vrcp.pop %v920
    %v967 = vrcp.pop %v922
    %v968 = vrcp.pop %v924
    %v969 = vrcp.pop %v926
    %v970 = vrcp.pop %v928
    %v971 = vrcp.pop %v930
    %v972 = vrcp.pop %v932
    %v973 = vrcp.pop %v934
    %v974 = vrcp.pop %v936
    %v975 = vrcp.pop %v938
    %v976 = vrcp.pop %v940
    %v977 = vrcp.pop %v942
    %v978 = vrcp.pop %v944
    %v979 = vrcp.pop %v946
    %v980 = vrcp.pop %v948
    %v981 = vmul.f32 %v822, %v949
    %v982 = vmul.f32 %v824, %v950
    %v983 = vmul.f32 %v826, %v951
    %v984 = vmul.f32 %v828, %v952
    %v985 = vmul.f32 %v830, %v953
    %v986 = vmul.f32 %v832, %v954
    %v987 = vmul.f32 %v834, %v955
    %v988 = vmul.f32 %v836, %v956
    %v989 = vmul.f32 %v838, %v957
    %v990 = vmul.f32 %v840, %v958
    %v991 = vmul.f32 %v842, %v959
    %v992 = vmul.f32 %v844, %v960
    %v993 = vmul.f32 %v846, %v961
    %v994 = vmul.f32 %v848, %v962
    %v995 = vmul.f32 %v850, %v963
    %v996 = vmul.f32 %v852, %v964
    %v997 = vmul.f32 %v854, %v965
    %v998 = vmul.f32 %v856, %v966
    %v999 = vmul.f32 %v858, %v967
    %v1000 = vmul.f32 %v860, %v968
    %v1001 = vmul.f32 %v862, %v969
    %v1002 = vmul.f32 %v864, %v970
    %v1003 = vmul.f32 %v866, %v971
    %v1004 = vmul.f32 %v868, %v972
    %v1005 = vmul.f32 %v870, %v973
    %v1006 = vmul.f32 %v872, %v974
    %v1007 = vmul.f32 %v874, %v975
    %v1008 = vmul.f32 %v876, %v976
    %v1009 = vmul.f32 %v878, %v977
    %v1010 = vmul.f32 %v880, %v978
    %v1011 = vmul.f32 %v882, %v979
    %v1012 = vmul.f32 %v884, %v980
    %1013 = vst [vmem:[#allocation2] sm:$0xff] %v981
    %1014 = vst [vmem:[#allocation2 + $0x8] sm:$0xff] %v982
    %1015 = vst [vmem:[#allocation2 + $0x10] sm:$0xff] %v983
    %1016 = vst [vmem:[#allocation2 + $0x18] sm:$0xff] %v984
    %1017 = vst [vmem:[#allocation2 + $0x20] sm:$0xff] %v985
    %1018 = vst [vmem:[#allocation2 + $0x28] sm:$0xff] %v986
    %1019 = vst [vmem:[#allocation2 + $0x30] sm:$0xff] %v987
    %1020 = vst [vmem:[#allocation2 + $0x38] sm:$0xff] %v988
    %1021 = vst [vmem:[#allocation2 + $0x40] sm:$0xff] %v989
    %1022 = vst [vmem:[#allocation2 + $0x48] sm:$0xff] %v990
    %1023 = vst [vmem:[#allocation2 + $0x50] sm:$0xff] %v991
    %1024 = vst [vmem:[#allocation2 + $0x58] sm:$0xff] %v992
    %1025 = vst [vmem:[#allocation2 + $0x60] sm:$0xff] %v993
    %1026 = vst [vmem:[#allocation2 + $0x68] sm:$0xff] %v994
    %1027 = vst [vmem:[#allocation2 + $0x70] sm:$0xff] %v995
    %1028 = vst [vmem:[#allocation2 + $0x78] sm:$0xff] %v996
    %1029 = vst [vmem:[#allocation2 + $0x80] sm:$0xff] %v997
    %1030 = vst [vmem:[#allocation2 + $0x88] sm:$0xff] %v998
    %1031 = vst [vmem:[#allocation2 + $0x90] sm:$0xff] %v999
    %1032 = vst [vmem:[#allocation2 + $0x98] sm:$0xff] %v1000
    %1033 = vst [vmem:[#allocation2 + $0xa0] sm:$0xff] %v1001
    %1034 = vst [vmem:[#allocation2 + $0xa8] sm:$0xff] %v1002
    %1035 = vst [vmem:[#allocation2 + $0xb0] sm:$0xff] %v1003
    %1036 = vst [vmem:[#allocation2 + $0xb8] sm:$0xff] %v1004
    %1037 = vst [vmem:[#allocation2 + $0xc0] sm:$0xff] %v1005
    %1038 = vst [vmem:[#allocation2 + $0xc8] sm:$0xff] %v1006
    %1039 = vst [vmem:[#allocation2 + $0xd0] sm:$0xff] %v1007
    %1040 = vst [vmem:[#allocation2 + $0xd8] sm:$0xff] %v1008
    %1041 = vst [vmem:[#allocation2 + $0xe0] sm:$0xff] %v1009
    %1042 = vst [vmem:[#allocation2 + $0xe8] sm:$0xff] %v1010
    %1043 = vst [vmem:[#allocation2 + $0xf0] sm:$0xff] %v1011
    %1044 = vst [vmem:[#allocation2 + $0xf8] sm:$0xff] %v1012
    // Predicated region
    $region30: #{tpu_custom_call.1} parent=1 // pred_check
      _
    $region31: #{tpu_custom_call.1} parent=1 // pred_check_branch
      %1046 = sbr.rel (0) target = $region33
    $region32: #{tpu_custom_call.1} parent=1 // pred_region
      %1048 = vsyncadd [#allocation3], 0
      %s1049 = sshll.u32 [#allocation2], 4
      %s1050 = int_to_ptr.vmem [resolvable:$true] %s1049
      %s1051 = sshll.u32 %s7, 4
      %s1052 = int_to_ptr.hbm [resolvable:$true] %s1051
      %1057 = dma.vmem_to_hbm [thread:$0]  %s1050, 4096, %s1052, [#allocation3], 128, 128, 8
    $region33: #{tpu_custom_call.1} parent=1 // pred_fallthru
      _
    // Predicated region
    $region34: #{tpu_custom_call.1} parent=1 // pred_check
      _
    $region35: #{tpu_custom_call.1} parent=1 // pred_check_branch
      %1059 = sbr.rel (0) target = $region37
    $region36: #{tpu_custom_call.1} parent=1 // pred_region
      %1061 = dma.done [#allocation3], 4096
    $region37: #{tpu_custom_call.1} parent=1 // pred_fallthru
      _
    %1062 = vsyncpa [#allocation3], 1

</llo_original>
